<compile_context>
chip_gen: v7x
topology: tpu7x:2x2x1
jax: 0.10.0
libtpu: 0.0.40
codegen_flags: <defaults>
</compile_context>

<pallas_src>
import functools

import jax
import jax.numpy as jnp
from jax.experimental import pallas as pl
from jax.experimental.pallas import tpu as pltpu


LANE = 128          # lane width of a vreg
CHUNK_ROWS = 32     # inner compute chunk: 32 rows x 128 lanes = 4096 boxes


def _round_up(x, m):
    return ((x + m - 1) // m) * m


def _inner_siou_kernel(box_ref, mask_ref, out_ref, acc_ref, *, eps, chunk_rows):
    # box_ref : [8, TM, 128] f32, coordinate-major (SoA): slab c = one coord.
    # mask_ref: [TM, 128] int8 (1 = foreground, 0 = background / padding).
    # out_ref : [1, 8, 128] f32 block = this split's partials
    #           (row 0 = masked loss sum, row 1 = foreground count, broadcast).
    # acc_ref : SMEM f32[2] running (loss_sum, fg_count) for this split.
    step = pl.program_id(1)

    @pl.when(step == 0)
    def _():
        acc_ref[0] = jnp.float32(0.0)
        acc_ref[1] = jnp.float32(0.0)

    n_chunks = box_ref.shape[1] // chunk_rows

    def body(j, carry):
        loss_acc, cnt_acc = carry
        r = pl.multiple_of(j * chunk_rows, chunk_rows)
        sl = pl.ds(r, chunk_rows)

        px1 = box_ref[0, sl, :]
        py1 = box_ref[1, sl, :]
        px2 = box_ref[2, sl, :]
        py2 = box_ref[3, sl, :]
        tx1 = box_ref[4, sl, :]
        ty1 = box_ref[5, sl, :]
        tx2 = box_ref[6, sl, :]
        ty2 = box_ref[7, sl, :]
        m = mask_ref[sl, :].astype(jnp.float32)

        iw = jnp.maximum(jnp.minimum(px2, tx2) - jnp.maximum(px1, tx1), 0.0)
        ih = jnp.maximum(jnp.minimum(py2, ty2) - jnp.maximum(py1, ty1), 0.0)
        inter = iw * ih
        union = ((px2 - px1) * (py2 - py1)
                 + (tx2 - tx1) * (ty2 - ty1) - inter)
        # Exact reciprocal keeps the divide on the EUP slot (off the VALU
        # chain) without losing the 1e-5 match to the reference.
        iou = inter * pl.reciprocal(union + eps, approx=False)
        return loss_acc + (1.0 - iou) * m, cnt_acc + m

    zeros = jnp.zeros((chunk_rows, LANE), jnp.float32)
    loss_acc, cnt_acc = jax.lax.fori_loop(0, n_chunks, body, (zeros, zeros))

    # One cross-lane (XLU) reduction per grid step; hides under the block DMA.
    acc_ref[0] += jnp.sum(loss_acc)
    acc_ref[1] += jnp.sum(cnt_acc)

    @pl.when(step == pl.num_programs(1) - 1)
    def _():
        row = jax.lax.broadcasted_iota(jnp.int32, (1, 8, LANE), 1)
        out_ref[...] = jnp.where(row == 0, acc_ref[0],
                                 jnp.where(row == 1, acc_ref[1], 0.0))


def inner_siou_loss(pred_bboxes, target_bboxes, fg_mask, eps=1e-7,
                    tile_boxes=131072, nsplit=2):
    """pred_bboxes, target_bboxes: [N, 4]; fg_mask: [N] bool. Returns scalar."""
    n = pred_bboxes.shape[0]

    # ---- tile sizing ------------------------------------------------------
    rows_needed = pl.cdiv(max(n, 1), LANE)                    # rows of 128 boxes
    rows_per_split = _round_up(pl.cdiv(rows_needed, nsplit), CHUNK_ROWS)
    tm_max = max(CHUNK_ROWS, (tile_boxes // LANE) // CHUNK_ROWS * CHUNK_ROWS)
    steps = pl.cdiv(rows_per_split, tm_max)                   # steps per split
    tm = _round_up(pl.cdiv(rows_per_split, steps), CHUNK_ROWS)  # rows per step
    total_rows = nsplit * steps * tm
    n_pad = total_rows * LANE

    # ---- pack to SoA [8, R, 128] + int8 mask ------------------------------
    # TODO(synk): produce this packed layout upstream (where the boxes are
    # generated) or verify the transpose+concat+pad fuses into a single XLA
    # copy; as a standalone pass it reads/writes about as many bytes as the
    # kernel itself.
    coords = jnp.concatenate(
        [pred_bboxes.astype(jnp.float32).T,
         target_bboxes.astype(jnp.float32).T], axis=0)         # [8, N]
    coords = jnp.pad(coords, ((0, 0), (0, n_pad - n)))
    boxes = coords.reshape(8, total_rows, LANE)                # free reshape
    mask = jnp.pad(fg_mask.astype(jnp.int8), (0, n_pad - n))
    mask = mask.reshape(total_rows, LANE)

    kernel = functools.partial(_inner_siou_kernel, eps=eps,
                               chunk_rows=CHUNK_ROWS)

    out = pl.pallas_call(
        kernel,
        out_shape=jax.ShapeDtypeStruct((nsplit, 8, LANE), jnp.float32),
        grid_spec=pltpu.PrefetchScalarGridSpec(
            num_scalar_prefetch=0,
            grid=(nsplit, steps),
            in_specs=[
                pl.BlockSpec((8, tm, LANE),
                             lambda c, i: (0, c * steps + i, 0)),
                pl.BlockSpec((tm, LANE),
                             lambda c, i: (c * steps + i, 0)),
            ],
            out_specs=pl.BlockSpec((1, 8, LANE), lambda c, i: (c, 0, 0)),
            scratch_shapes=[pltpu.SMEM((2,), jnp.float32)],
        ),
        compiler_params=pltpu.CompilerParams(
            # v7x: the two TensorCores split the leading axis; on 1-TC chips
            # it is just an outer loop.  32 MiB scoped VMEM is safe on every
            # generation and leaves headroom for larger tile_boxes.
            dimension_semantics=("parallel", "arbitrary"),
            vmem_limit_bytes=32 * 1024 * 1024),
    )(boxes, mask)

    loss_sum = out[:, 0, 0].sum()
    fg_count = out[:, 1, 0].sum()
    # Mean over foreground boxes (NaN when there are none, matching
    # torch.Tensor.mean() on an empty selection).
    return loss_sum / fg_count


def _reference(pred, tgt, mask, eps=1e-7):
    m = mask.astype(jnp.float32)
    px1, py1, px2, py2 = pred[:, 0], pred[:, 1], pred[:, 2], pred[:, 3]
    tx1, ty1, tx2, ty2 = tgt[:, 0], tgt[:, 1], tgt[:, 2], tgt[:, 3]
    iw = jnp.maximum(jnp.minimum(px2, tx2) - jnp.maximum(px1, tx1), 0.0)
    ih = jnp.maximum(jnp.minimum(py2, ty2) - jnp.maximum(py1, ty1), 0.0)
    inter = iw * ih
    union = (px2 - px1) * (py2 - py1) + (tx2 - tx1) * (ty2 - ty1) - inter
    loss = 1.0 - inter / (union + eps)
    return jnp.sum(loss * m) / jnp.sum(m)


if __name__ == "__main__":
    key = jax.random.PRNGKey(0)
    k1, k2, k3 = jax.random.split(key, 3)
    N = 64

    # Build boxes as (x1, y1, x2, y2) with x2 > x1, y2 > y1.
    p_xy = jax.random.uniform(k1, (N, 2), jnp.float32, 0.0, 10.0)
    p_wh = jax.random.uniform(k1, (N, 2), jnp.float32, 0.5, 5.0)
    pred = jnp.concatenate([p_xy, p_xy + p_wh], axis=1)

    t_xy = jax.random.uniform(k2, (N, 2), jnp.float32, 0.0, 10.0)
    t_wh = jax.random.uniform(k2, (N, 2), jnp.float32, 0.5, 5.0)
    tgt = jnp.concatenate([t_xy, t_xy + t_wh], axis=1)

    fg_mask = jax.random.uniform(k3, (N,)) > 0.3  # bool [N]

    out = inner_siou_loss(pred, tgt, fg_mask)
    jax.block_until_ready(out)

    ref = _reference(pred, tgt, fg_mask)
    assert jnp.allclose(out, ref, atol=1e-5, rtol=1e-5), (out, ref)
    print("KERNEL_OK")
</pallas_src>

<mosaic_0001>
module attributes {stable_mosaic.version = 11 : i64} {
  func.func @_inner_siou_kernel(%arg0: i32, %arg1: i32, %arg2: memref<8x32x128xf32, #tpu.memory_space<vmem>>, %arg3: memref<32x128xi8, #tpu.memory_space<vmem>>, %arg4: memref<1x8x128xf32, #tpu.memory_space<vmem>>, %arg5: memref<2xf32, #tpu.memory_space<smem>>) attributes {dimension_semantics = [#tpu.dimension_semantics<parallel>, #tpu.dimension_semantics<arbitrary>], iteration_bounds = array<i64: 2, 1>, scalar_prefetch = 0 : i64, scratch_operands = 1 : i64, tpu.core_type = #tpu.core_type<tc>, window_params = [{transform_indices = @transform_0, window_bounds = array<i64: 8, 32, 128>}, {transform_indices = @transform_1, window_bounds = array<i64: 32, 128>}, {transform_indices = @transform_2, window_bounds = array<i64: 1, 8, 128>}]} {
    %c0_i32 = arith.constant 0 : i32
    %0 = arith.cmpi eq, %arg1, %c0_i32 : i32
    %1 = arith.extui %0 : i1 to i32
    %c0_i32_0 = arith.constant 0 : i32
    %2 = arith.cmpi ne, %1, %c0_i32_0 : i32
    scf.if %2 {
      %cst_23 = arith.constant 0.000000e+00 : f32
      %c0_24 = arith.constant 0 : index
      %78 = memref.load %arg5[%c0_24] : memref<2xf32, #tpu.memory_space<smem>>
      memref.store %cst_23, %arg5[%c0_24] : memref<2xf32, #tpu.memory_space<smem>>
      %cst_25 = arith.constant 0.000000e+00 : f32
      %c1_26 = arith.constant 1 : index
      %79 = memref.load %arg5[%c1_26] : memref<2xf32, #tpu.memory_space<smem>>
      memref.store %cst_25, %arg5[%c1_26] : memref<2xf32, #tpu.memory_space<smem>>
    } else {
    }
    %cst = arith.constant 0.000000e+00 : f32
    %3 = vector.broadcast %cst : f32 to vector<32x128xf32>
    %c0_i32_1 = arith.constant 0 : i32
    %c32_i32 = arith.constant 32 : i32
    %4 = arith.muli %c0_i32_1, %c32_i32 : i32
    %5 = tpu.assume_multiple %4, 32 : i32
    %c0 = arith.constant 0 : index
    %6 = arith.index_cast %5 : i32 to index
    %c0_2 = arith.constant 0 : index
    %7 = vector.load %arg2[%c0, %6, %c0_2] : memref<8x32x128xf32, #tpu.memory_space<vmem>>, vector<1x32x128xf32>
    %8 = vector.shape_cast %7 : vector<1x32x128xf32> to vector<32x128xf32>
    %c1 = arith.constant 1 : index
    %9 = arith.index_cast %5 : i32 to index
    %c0_3 = arith.constant 0 : index
    %10 = vector.load %arg2[%c1, %9, %c0_3] : memref<8x32x128xf32, #tpu.memory_space<vmem>>, vector<1x32x128xf32>
    %11 = vector.shape_cast %10 : vector<1x32x128xf32> to vector<32x128xf32>
    %c2 = arith.constant 2 : index
    %12 = arith.index_cast %5 : i32 to index
    %c0_4 = arith.constant 0 : index
    %13 = vector.load %arg2[%c2, %12, %c0_4] : memref<8x32x128xf32, #tpu.memory_space<vmem>>, vector<1x32x128xf32>
    %14 = vector.shape_cast %13 : vector<1x32x128xf32> to vector<32x128xf32>
    %c3 = arith.constant 3 : index
    %15 = arith.index_cast %5 : i32 to index
    %c0_5 = arith.constant 0 : index
    %16 = vector.load %arg2[%c3, %15, %c0_5] : memref<8x32x128xf32, #tpu.memory_space<vmem>>, vector<1x32x128xf32>
    %17 = vector.shape_cast %16 : vector<1x32x128xf32> to vector<32x128xf32>
    %c4 = arith.constant 4 : index
    %18 = arith.index_cast %5 : i32 to index
    %c0_6 = arith.constant 0 : index
    %19 = vector.load %arg2[%c4, %18, %c0_6] : memref<8x32x128xf32, #tpu.memory_space<vmem>>, vector<1x32x128xf32>
    %20 = vector.shape_cast %19 : vector<1x32x128xf32> to vector<32x128xf32>
    %c5 = arith.constant 5 : index
    %21 = arith.index_cast %5 : i32 to index
    %c0_7 = arith.constant 0 : index
    %22 = vector.load %arg2[%c5, %21, %c0_7] : memref<8x32x128xf32, #tpu.memory_space<vmem>>, vector<1x32x128xf32>
    %23 = vector.shape_cast %22 : vector<1x32x128xf32> to vector<32x128xf32>
    %c6 = arith.constant 6 : index
    %24 = arith.index_cast %5 : i32 to index
    %c0_8 = arith.constant 0 : index
    %25 = vector.load %arg2[%c6, %24, %c0_8] : memref<8x32x128xf32, #tpu.memory_space<vmem>>, vector<1x32x128xf32>
    %26 = vector.shape_cast %25 : vector<1x32x128xf32> to vector<32x128xf32>
    %c7 = arith.constant 7 : index
    %27 = arith.index_cast %5 : i32 to index
    %c0_9 = arith.constant 0 : index
    %28 = vector.load %arg2[%c7, %27, %c0_9] : memref<8x32x128xf32, #tpu.memory_space<vmem>>, vector<1x32x128xf32>
    %29 = vector.shape_cast %28 : vector<1x32x128xf32> to vector<32x128xf32>
    %30 = arith.index_cast %5 : i32 to index
    %c0_10 = arith.constant 0 : index
    %31 = vector.load %arg3[%30, %c0_10] : memref<32x128xi8, #tpu.memory_space<vmem>>, vector<32x128xi8>
    %32 = arith.sitofp %31 : vector<32x128xi8> to vector<32x128xf32>
    %33 = arith.minimumf %14, %26 : vector<32x128xf32>
    %34 = arith.maximumf %8, %20 : vector<32x128xf32>
    %35 = arith.subf %33, %34 : vector<32x128xf32>
    %cst_11 = arith.constant 0.000000e+00 : f32
    %36 = vector.broadcast %cst_11 : f32 to vector<32x128xf32>
    %37 = arith.maximumf %35, %36 : vector<32x128xf32>
    %38 = arith.minimumf %17, %29 : vector<32x128xf32>
    %39 = arith.maximumf %11, %23 : vector<32x128xf32>
    %40 = arith.subf %38, %39 : vector<32x128xf32>
    %cst_12 = arith.constant 0.000000e+00 : f32
    %41 = vector.broadcast %cst_12 : f32 to vector<32x128xf32>
    %42 = arith.maximumf %40, %41 : vector<32x128xf32>
    %43 = arith.mulf %37, %42 : vector<32x128xf32>
    %44 = arith.subf %14, %8 : vector<32x128xf32>
    %45 = arith.subf %17, %11 : vector<32x128xf32>
    %46 = arith.mulf %44, %45 : vector<32x128xf32>
    %47 = arith.subf %26, %20 : vector<32x128xf32>
    %48 = arith.subf %29, %23 : vector<32x128xf32>
    %49 = arith.mulf %47, %48 : vector<32x128xf32>
    %50 = arith.addf %46, %49 : vector<32x128xf32>
    %51 = arith.subf %50, %43 : vector<32x128xf32>
    %cst_13 = arith.constant 1.000000e-07 : f32
    %52 = vector.broadcast %cst_13 : f32 to vector<32x128xf32>
    %53 = arith.addf %51, %52 : vector<32x128xf32>
    %54 = tpu.reciprocal %53 : vector<32x128xf32> -> vector<32x128xf32>
    %55 = arith.mulf %43, %54 : vector<32x128xf32>
    %cst_14 = arith.constant 1.000000e+00 : f32
    %56 = vector.broadcast %cst_14 : f32 to vector<32x128xf32>
    %57 = arith.subf %56, %55 : vector<32x128xf32>
    %58 = arith.mulf %57, %32 : vector<32x128xf32>
    %59 = arith.addf %3, %58 : vector<32x128xf32>
    %60 = arith.addf %3, %32 : vector<32x128xf32>
    %c1_i32 = arith.constant 1 : i32
    %c0_15 = arith.constant 0 : index
    %61 = memref.load %arg5[%c0_15] : memref<2xf32, #tpu.memory_space<smem>>
    %62 = vector.shape_cast %59 : vector<32x128xf32> to vector<1x32x128xf32>
    %cst_16 = arith.constant dense<0.000000e+00> : vector<1xf32>
    %63 = vector.multi_reduction <add>, %62, %cst_16 [1, 2] : vector<1x32x128xf32> to vector<1xf32>
    %64 = vector.shape_cast %63 : vector<1xf32> to vector<1x1x1xf32>
    %65 = vector.extract %64[0, 0, 0] : f32 from vector<1x1x1xf32>
    %66 = arith.addf %61, %65 : f32
    %c0_17 = arith.constant 0 : index
    %67 = memref.load %arg5[%c0_17] : memref<2xf32, #tpu.memory_space<smem>>
    memref.store %66, %arg5[%c0_17] : memref<2xf32, #tpu.memory_space<smem>>
    %c1_18 = arith.constant 1 : index
    %68 = memref.load %arg5[%c1_18] : memref<2xf32, #tpu.memory_space<smem>>
    %69 = vector.shape_cast %60 : vector<32x128xf32> to vector<1x32x128xf32>
    %cst_19 = arith.constant dense<0.000000e+00> : vector<1xf32>
    %70 = vector.multi_reduction <add>, %69, %cst_19 [1, 2] : vector<1x32x128xf32> to vector<1xf32>
    %71 = vector.shape_cast %70 : vector<1xf32> to vector<1x1x1xf32>
    %72 = vector.extract %71[0, 0, 0] : f32 from vector<1x1x1xf32>
    %73 = arith.addf %68, %72 : f32
    %c1_20 = arith.constant 1 : index
    %74 = memref.load %arg5[%c1_20] : memref<2xf32, #tpu.memory_space<smem>>
    memref.store %73, %arg5[%c1_20] : memref<2xf32, #tpu.memory_space<smem>>
    %c0_i32_21 = arith.constant 0 : i32
    %75 = arith.cmpi eq, %arg1, %c0_i32_21 : i32
    %76 = arith.extui %75 : i1 to i32
    %c0_i32_22 = arith.constant 0 : i32
    %77 = arith.cmpi ne, %76, %c0_i32_22 : i32
    scf.if %77 {
      %78 = tpu.iota {dimensions = array<i32: 1>} : vector<1x8x128xi32>
      %c0_i32_23 = arith.constant 0 : i32
      %79 = vector.broadcast %c0_i32_23 : i32 to vector<1x8x128xi32>
      %80 = arith.cmpi eq, %78, %79 : vector<1x8x128xi32>
      %c0_24 = arith.constant 0 : index
      %81 = memref.load %arg5[%c0_24] : memref<2xf32, #tpu.memory_space<smem>>
      %c1_i32_25 = arith.constant 1 : i32
      %82 = vector.broadcast %c1_i32_25 : i32 to vector<1x8x128xi32>
      %83 = arith.cmpi eq, %78, %82 : vector<1x8x128xi32>
      %c1_26 = arith.constant 1 : index
      %84 = memref.load %arg5[%c1_26] : memref<2xf32, #tpu.memory_space<smem>>
      %cst_27 = arith.constant 0.000000e+00 : f32
      %85 = vector.broadcast %84 : f32 to vector<1x8x128xf32>
      %86 = vector.broadcast %cst_27 : f32 to vector<1x8x128xf32>
      %87 = arith.select %83, %85, %86 : vector<1x8x128xi1>, vector<1x8x128xf32>
      %88 = vector.broadcast %81 : f32 to vector<1x8x128xf32>
      %89 = arith.select %80, %88, %87 : vector<1x8x128xi1>, vector<1x8x128xf32>
      %c0_28 = arith.constant 0 : index
      %c0_29 = arith.constant 0 : index
      %c0_30 = arith.constant 0 : index
      %90 = vector.load %arg4[%c0_28, %c0_29, %c0_30] : memref<1x8x128xf32, #tpu.memory_space<vmem>>, vector<1x8x128xf32>
      tpu.vector_store %arg4[%c0_28, %c0_29, %c0_30], %89 {strides = array<i32>} : memref<1x8x128xf32, #tpu.memory_space<vmem>>, vector<1x8x128xf32>,
    } else {
    }
    return
  }
  func.func @transform_0(%arg0: i32, %arg1: i32) -> (i32, i32, i32) {
    %c1_i32 = arith.constant 1 : i32
    %0 = arith.muli %arg0, %c1_i32 : i32
    %1 = arith.addi %0, %arg1 : i32
    %c0_i32 = arith.constant 0 : i32
    %c0_i32_0 = arith.constant 0 : i32
    %c0_i32_1 = arith.constant 0 : i32
    return %c0_i32, %1, %c0_i32_0 : i32, i32, i32
  }
  func.func @transform_1(%arg0: i32, %arg1: i32) -> (i32, i32) {
    %c1_i32 = arith.constant 1 : i32
    %0 = arith.muli %arg0, %c1_i32 : i32
    %1 = arith.addi %0, %arg1 : i32
    %c0_i32 = arith.constant 0 : i32
    %c0_i32_0 = arith.constant 0 : i32
    return %1, %c0_i32 : i32, i32
  }
  func.func @transform_2(%arg0: i32, %arg1: i32) -> (i32, i32, i32) {
    %c0_i32 = arith.constant 0 : i32
    %c0_i32_0 = arith.constant 0 : i32
    %c0_i32_1 = arith.constant 0 : i32
    return %arg0, %c0_i32, %c0_i32_0 : i32, i32, i32
  }
}

</mosaic_0001>

<llo_original>
// kernel: tpu_custom_call.1
$region0: #{tpu_custom_call.1}
  #allocation0 [shape = 'u32[]', space=smem, size = 0x4, offset = 0x4, fixed_abs, tag = 'smem constant byte address 0x4 - core index']
  #allocation1 [shape = 'u32[144,128]{1,0:T(1,128)}', space=vmem, size = 0x12000, scoped, tag = 'internal scratch']
  #allocation2 [shape = 'f32[2]{0:T(128)}', space=smem, size = 0x200, scoped, tag = 'scratch operand']
  #allocation9 [shape = 's32[]', space=sflag, size = 0x4, offset = 0, fixed_abs, tag = 'sflag constant byte address 0x0 - dummy sync flag']
  %s0 = inlined_call_operand.hbm [shape: f32[8,64,128], index: 0, kind: input, shape index: {}]
  %s1 = inlined_call_operand.hbm [shape: s8[64,128], index: 1, kind: input, shape index: {}]
  %s2 = inlined_call_operand.hbm [shape: f32[2,8,128], index: 2, kind: output, shape index: {}]
  %s3 = sld [smem:[#allocation0]]
  $region57: #{tpu_custom_call.1} parent=0
    _
  %s5 = ssub.s32 1, %s3
  %s6 = scalar_select 0, %s5, %s3
  $region1: #{tpu_custom_call.1} parent=0
    #allocation3 [shape = 'u8[262144]{0}', space=vmem, size = 0x40000, scoped, tag = 'input window, operand 0']
    #allocation4 [shape = 's32[2]{0}', space=sflag, size = 0x8, scoped, tag = 'scoped memory for tpu_custom_call.1']
    #allocation5 [shape = 's32[2]{0}', space=sflag, size = 0x8, scoped, tag = 'scoped memory for tpu_custom_call.1']
    #allocation6 [shape = 'u8[8192]{0}', space=vmem, size = 0x2000, scoped, tag = 'input window, operand 1']
    #allocation7 [shape = 's32[2]{0}', space=sflag, size = 0x8, scoped, tag = 'scoped memory for tpu_custom_call.1']
    #allocation8 [shape = 'u8[8192]{0}', space=vmem, size = 0x2000, scoped, tag = 'output window, operand 0']
    %7 = vsyncpa [#allocation4], 0
    %s8 = scalar_lea.sflag [#allocation4], 1
    %9 = vsyncpa %s8, 0
    %10 = vsyncpa [#allocation7], 0
    %s11 = scalar_lea.sflag [#allocation7], 1
    %12 = vsyncpa %s11, 0
    %13 = vsyncpa [#allocation5], 0
    %s14 = scalar_lea.sflag [#allocation5], 1
    %15 = vsyncpa %s14, 0
    loop: start=0, step=1, limit=4
    $region2: #{tpu_custom_call.1} parent=1 // loop_pre_header
      _
    $region3: #{tpu_custom_call.1} parent=1 // loop_header
      %s17 = sphi 0, %s21
      %p18 = scmp.ge.s32.totalorder %s17, 4
      %s24 = sphi 0, %s36
      %s25 = sphi 0, %s32
      %s26 = sphi 0, %s24
      %s27 = sphi 0, %s25
      %s28 = sphi 0, %s26
      %s29 = sphi 0, %s27
      %s41 = sphi 0, %s43
      %s44 = sphi 0, %s41
      %s45 = sphi 0, %s44
      %s61 = sphi 0, %s45
      %s69 = sphi 0, %s71
      %s72 = sphi 0, %s69
      %s73 = sphi 0, %s72
      %s89 = sphi 0, %s73
      %s95 = sphi 0, %s97
      %s98 = sphi 0, %s95
      %s99 = sphi 0, %s98
      %s115 = sphi 0, %s99
    $region4: #{tpu_custom_call.1} parent=1 // loop_header_branch
      %20 = sbr.rel (%p18) target = $region8
    $region5: #{tpu_custom_call.1} parent=1 // loop_body
      %s22 = ssub.s32 %s17, 1
      %s23 = ssub.s32 %s17, 2
      %s30 = sadd.s32 1, %s25
      %p31 = scmp.ge.s32.totalorder %s30, 1
      %s32 = scalar_select %p31, 0, %s30
      %s33 = sadd.s32 1, %s24
      %s34 = scalar_select %p31, %s33, %s24
      %p35 = scmp.ge.s32.totalorder %s34, 2
      %s36 = scalar_select %p35, 0, %s34
      %s37 = sadd.s32 %s24, %s25
      %s38 = sadd.s32 %s36, %s32
      %s39 = ssub.s32 %s37, %s38
      %p40 = scmp.eq.s32.totalorder %s39, 0
      %s42 = sadd.s32 %s41, 1
      %s43 = scalar_select %p40, %s41, %s42
      %p46 = pneg %p40
      %p47 = scmp.eq.s32.totalorder %s17, 1
      %p48 = por %p46, %p47
      %p49 = scmp.ne.s32.totalorder %s41, %s44
      %p50 = scmp.eq.s32.totalorder %s17, 0
      %p51 = por %p49, %p50
      %p52 = scmp.ne.s32.totalorder %s41, %s44
      %p53 = scmp.eq.s32.totalorder %s22, 1
      %p54 = por %p52, %p53
      %p55 = scmp.ne.s32.totalorder %s44, %s45
      %p56 = scmp.eq.s32.totalorder %s22, 0
      %p57 = por %p55, %p56
      %p58 = scmp.ne.s32.totalorder %s44, %s45
      %p59 = scmp.eq.s32.totalorder %s23, 1
      %p60 = por %p58, %p59
      %p62 = scmp.ne.s32.totalorder %s45, %s61
      %p63 = scmp.eq.s32.totalorder %s23, 0
      %p64 = por %p62, %p63
      %s65 = sadd.s32 %s24, %s25
      %s66 = sadd.s32 %s36, %s32
      %s67 = ssub.s32 %s65, %s66
      %p68 = scmp.eq.s32.totalorder %s67, 0
      %s70 = sadd.s32 %s69, 1
      %s71 = scalar_select %p68, %s69, %s70
      %p74 = pneg %p68
      %p75 = scmp.eq.s32.totalorder %s17, 1
      %p76 = por %p74, %p75
      %p77 = scmp.ne.s32.totalorder %s69, %s72
      %p78 = scmp.eq.s32.totalorder %s17, 0
      %p79 = por %p77, %p78
      %p80 = scmp.ne.s32.totalorder %s69, %s72
      %p81 = scmp.eq.s32.totalorder %s22, 1
      %p82 = por %p80, %p81
      %p83 = scmp.ne.s32.totalorder %s72, %s73
      %p84 = scmp.eq.s32.totalorder %s22, 0
      %p85 = por %p83, %p84
      %p86 = scmp.ne.s32.totalorder %s72, %s73
      %p87 = scmp.eq.s32.totalorder %s23, 1
      %p88 = por %p86, %p87
      %p90 = scmp.ne.s32.totalorder %s73, %s89
      %p91 = scmp.eq.s32.totalorder %s23, 0
      %p92 = por %p90, %p91
      %s93 = ssub.s32 %s24, %s36
      %p94 = scmp.eq.s32.totalorder %s93, 0
      %s96 = sadd.s32 %s95, 1
      %s97 = scalar_select %p94, %s95, %s96
      %p100 = pneg %p94
      %p101 = scmp.eq.s32.totalorder %s17, 1
      %p102 = por %p100, %p101
      %p103 = scmp.ne.s32.totalorder %s95, %s98
      %p104 = scmp.eq.s32.totalorder %s17, 0
      %p105 = por %p103, %p104
      %p106 = scmp.ne.s32.totalorder %s95, %s98
      %p107 = scmp.eq.s32.totalorder %s22, 1
      %p108 = por %p106, %p107
      %p109 = scmp.ne.s32.totalorder %s98, %s99
      %p110 = scmp.eq.s32.totalorder %s22, 0
      %p111 = por %p109, %p110
      %p112 = scmp.ne.s32.totalorder %s98, %s99
      %p113 = scmp.eq.s32.totalorder %s23, 1
      %p114 = por %p112, %p113
      %p116 = scmp.ne.s32.totalorder %s99, %s115
      %p117 = scmp.eq.s32.totalorder %s23, 0
      %p118 = por %p116, %p117
      %p119 = scmp.le.s32.totalorder 1, %s17
      %p120 = scmp.lt.s32.totalorder %s17, 3
      %p121 = pnand %p119, %p120
      %p122 = pneg %p121
      // Predicated region
      $region9: #{tpu_custom_call.1} parent=5 // pred_check
        _
      $region10: #{tpu_custom_call.1} parent=5 // pred_check_branch
        %124 = sbr.rel (%p121) target = $region12
      $region11: #{tpu_custom_call.1} parent=5 // pred_region
        %s125 = ssub.s32 %s17, 1
      $region12: #{tpu_custom_call.1} parent=5 // pred_fallthru
        _
      %p126 = scmp.lt.s32.totalorder %s17, 2
      // Predicated region
      $region13: #{tpu_custom_call.1} parent=5 // pred_check
        %p127 = pneg %p126
      $region14: #{tpu_custom_call.1} parent=5 // pred_check_branch
        %129 = sbr.rel (%p127) target = $region16
      $region15: #{tpu_custom_call.1} parent=5 // pred_region
        // Predicated region
        $region17: #{tpu_custom_call.1} parent=15 // pred_check
          %p130 = pneg %p51
        $region18: #{tpu_custom_call.1} parent=15 // pred_check_branch
          %132 = sbr.rel (%p130) target = $region20
        $region19: #{tpu_custom_call.1} parent=15 // pred_region
          #allocation10 [shape = 'u32[6]{0}', space=smem, size = 0x18, scoped, tag = 'DMA stride descriptor']
          %s133 = sand.u32 %s41, 1
          %s134 = scalar_lea.sflag [#allocation4], %s133
          %s135 = sand.u32 %s41, 1
          %s136 = smul.addr %s135, 256
          %s137 = scalar_lea.vmem [#allocation3], %s136
          %s138 = sadd.s32 %s24, %s25
          %s139 = smul.u32 4, %s138
          %s141 = ssub.s32 4096, 4096
          %142 = vsyncadd %s134, %s141
          %s143 = smul.addr %s139, 128
          %s144 = scalar_lea.hbm %s0, %s143
          %s146 = sshll.u32 1, 14
          %s147 = sxor.u32 4294967295, %s146
          %s149 = sld [smem:[#allocation0]]
          %s150 = sadd.s32 2, %s149
          %s152 = sshll.u32 7, 26
          %s153 = sxor.u32 4294967295, %s152
          %s154 = sand.u32 0, %s153
          %s155 = sshll.u32 %s150, 26
          %s156 = sor.u32 %s154, %s155
          %s157 = sshll.u32 %s137, 4
          %s158 = int_to_ptr.vmem [resolvable:$true] %s157
          %164 = sst [smem:[#allocation10]] 1024
          %s165 = scalar_lea.smem [#allocation10], 1
          %166 = sst [smem:[%s165]] 512
          %s167 = scalar_lea.smem [#allocation10], 2
          %168 = sst [smem:[%s167]] 4
          %s169 = scalar_lea.smem [#allocation10], 3
          %170 = sst [smem:[%s169]] 128
          %s171 = scalar_lea.smem [#allocation10], 4
          %172 = sst [smem:[%s171]] 128
          %s173 = scalar_lea.smem [#allocation10], 5
          %174 = sst [smem:[%s173]] 8
          %176 = dma.general %s144, 4096, %s158, %s134, [#allocation9], [#allocation10], %s156, 0
        $region20: #{tpu_custom_call.1} parent=15 // pred_fallthru
          _
        // Predicated region
        $region21: #{tpu_custom_call.1} parent=15 // pred_check
          %p177 = pneg %p79
        $region22: #{tpu_custom_call.1} parent=15 // pred_check_branch
          %179 = sbr.rel (%p177) target = $region24
        $region23: #{tpu_custom_call.1} parent=15 // pred_region
          %s180 = sand.u32 %s69, 1
          %s181 = scalar_lea.sflag [#allocation7], %s180
          %s182 = sand.u32 %s69, 1
          %s183 = smul.addr %s182, 8
          %s184 = scalar_lea.vmem [#allocation6], %s183
          %s185 = sadd.s32 %s24, %s25
          %s187 = ssub.s32 128, 128
          %188 = vsyncadd %s181, %s187
          %s189 = smul.addr %s185, 128
          %s190 = scalar_lea.hbm %s1, %s189
          %s192 = sshll.u32 %s184, 4
          %s193 = int_to_ptr.vmem [resolvable:$true] %s192
          %195 = dma.hbm_to_vmem [thread:$0]  %s190, 128, %s193, %s181
        $region24: #{tpu_custom_call.1} parent=15 // pred_fallthru
          _
      $region16: #{tpu_custom_call.1} parent=5 // pred_fallthru
        _
      %p196 = scmp.le.s32.totalorder 1, %s17
      %p197 = scmp.lt.s32.totalorder %s17, 3
      %p198 = pnand %p196, %p197
      %p199 = pneg %p198
      // Predicated region
      $region25: #{tpu_custom_call.1} parent=5 // pred_check
        _
      $region26: #{tpu_custom_call.1} parent=5 // pred_check_branch
        %201 = sbr.rel (%p198) target = $region28
      $region27: #{tpu_custom_call.1} parent=5 // pred_region
        %s202 = ssub.s32 %s17, 1
        %s203 = sand.u32 %s44, 1
        %s204 = scalar_lea.sflag [#allocation4], %s203
        %s205 = sand.u32 %s44, 1
        %s206 = smul.addr %s205, 256
        %s207 = scalar_lea.vmem [#allocation3], %s206
        // Predicated region
        $region29: #{tpu_custom_call.1} parent=27 // pred_check
          %p208 = pneg %p57
        $region30: #{tpu_custom_call.1} parent=27 // pred_check_branch
          %210 = sbr.rel (%p208) target = $region32
        $region31: #{tpu_custom_call.1} parent=27 // pred_region
          %211 = dma.done %s204, 4096
        $region32: #{tpu_custom_call.1} parent=27 // pred_fallthru
          _
        %s212 = sand.u32 %s72, 1
        %s213 = scalar_lea.sflag [#allocation7], %s212
        %s214 = sand.u32 %s72, 1
        %s215 = smul.addr %s214, 8
        %s216 = scalar_lea.vmem [#allocation6], %s215
        // Predicated region
        $region33: #{tpu_custom_call.1} parent=27 // pred_check
          %p217 = pneg %p85
        $region34: #{tpu_custom_call.1} parent=27 // pred_check_branch
          %219 = sbr.rel (%p217) target = $region36
        $region35: #{tpu_custom_call.1} parent=27 // pred_region
          %220 = dma.done %s213, 128
        $region36: #{tpu_custom_call.1} parent=27 // pred_fallthru
          _
        %s221 = sand.u32 %s44, 1
        %s222 = scalar_lea.sflag [#allocation4], %s221
        %s223 = sand.u32 %s44, 1
        %s224 = smul.addr %s223, 256
        %s225 = scalar_lea.vmem [#allocation3], %s224
        %p226 = pneg %p57
        %p227 = pneg %p54
        %s228 = sand.u32 %s72, 1
        %s229 = scalar_lea.sflag [#allocation7], %s228
        %s230 = sand.u32 %s72, 1
        %s231 = smul.addr %s230, 8
        %s232 = scalar_lea.vmem [#allocation6], %s231
        %p233 = pneg %p85
        %p234 = pneg %p82
        %p235 = pneg %p111
        %p236 = pneg %p108
        %s237 = sand.u32 %s98, 1
        %s238 = scalar_lea.sflag [#allocation5], %s237
        %s239 = sand.u32 %s98, 1
        %s240 = smul.addr %s239, 8
        %s241 = scalar_lea.vmem [#allocation8], %s240
        %s242 = sadd.s32 %s26, %s27
        %s243 = smul.u32 4, %s242
        %s244 = sadd.s32 %s26, %s27
        %p245 = scmp.eq.s32.totalorder %s27, 0
        // Predicated region
        $region37: #{tpu_custom_call.1} parent=27 // pred_check
          %p246 = pneg %p245
        $region38: #{tpu_custom_call.1} parent=27 // pred_check_branch
          %248 = sbr.rel (%p246) target = $region40
        $region39: #{tpu_custom_call.1} parent=27 // pred_region
          %s249 = scalar_lea.smem [#allocation2], 0
          %250 = sst [smem:[%s249]] 0.0
          %s251 = scalar_lea.smem [#allocation2], 1
          %252 = sst [smem:[%s251]] 0.0
        $region40: #{tpu_custom_call.1} parent=27 // pred_fallthru
          _
        %v253 = vld [vmem:[%s207] sm:$0xff]
        %v254 = vld [vmem:[%s207 + $0x8] sm:$0xff]
        %v255 = vld [vmem:[%s207 + $0x10] sm:$0xff]
        %v256 = vld [vmem:[%s207 + $0x18] sm:$0xff]
        %s257 = sadd.s32 0, 32
        %s258 = scalar_lea.vmem %s207, %s257 [#allocation3]
        %v259 = vld [vmem:[%s258] sm:$0xff]
        %v260 = vld [vmem:[%s258 + $0x8] sm:$0xff]
        %v261 = vld [vmem:[%s258 + $0x10] sm:$0xff]
        %v262 = vld [vmem:[%s258 + $0x18] sm:$0xff]
        %s263 = sadd.s32 0, 64
        %s264 = scalar_lea.vmem %s207, %s263 [#allocation3]
        %v265 = vld [vmem:[%s264] sm:$0xff]
        %v266 = vld [vmem:[%s264 + $0x8] sm:$0xff]
        %v267 = vld [vmem:[%s264 + $0x10] sm:$0xff]
        %v268 = vld [vmem:[%s264 + $0x18] sm:$0xff]
        %s269 = sadd.s32 0, 96
        %s270 = scalar_lea.vmem %s207, %s269 [#allocation3]
        %v271 = vld [vmem:[%s270] sm:$0xff]
        %v272 = vld [vmem:[%s270 + $0x8] sm:$0xff]
        %v273 = vld [vmem:[%s270 + $0x10] sm:$0xff]
        %v274 = vld [vmem:[%s270 + $0x18] sm:$0xff]
        %s275 = sadd.s32 0, 128
        %s276 = scalar_lea.vmem %s207, %s275 [#allocation3]
        %v277 = vld [vmem:[%s276] sm:$0xff]
        %v278 = vld [vmem:[%s276 + $0x8] sm:$0xff]
        %v279 = vld [vmem:[%s276 + $0x10] sm:$0xff]
        %v280 = vld [vmem:[%s276 + $0x18] sm:$0xff]
        %s281 = sadd.s32 0, 160
        %s282 = scalar_lea.vmem %s207, %s281 [#allocation3]
        %v283 = vld [vmem:[%s282] sm:$0xff]
        %v284 = vld [vmem:[%s282 + $0x8] sm:$0xff]
        %v285 = vld [vmem:[%s282 + $0x10] sm:$0xff]
        %v286 = vld [vmem:[%s282 + $0x18] sm:$0xff]
        %s287 = sadd.s32 0, 192
        %s288 = scalar_lea.vmem %s207, %s287 [#allocation3]
        %v289 = vld [vmem:[%s288] sm:$0xff]
        %v290 = vld [vmem:[%s288 + $0x8] sm:$0xff]
        %v291 = vld [vmem:[%s288 + $0x10] sm:$0xff]
        %v292 = vld [vmem:[%s288 + $0x18] sm:$0xff]
        %s293 = sadd.s32 0, 224
        %s294 = scalar_lea.vmem %s207, %s293 [#allocation3]
        %v295 = vld [vmem:[%s294] sm:$0xff]
        %v296 = vld [vmem:[%s294 + $0x8] sm:$0xff]
        %v297 = vld [vmem:[%s294 + $0x10] sm:$0xff]
        %v298 = vld [vmem:[%s294 + $0x18] sm:$0xff]
        %v299 = vld [vmem:[%s216] sm:$0xff]
        %v300 = vunpack.c.0.s8 %v299
        %v301 = vunpack.c.1.s8 %v299
        %v302 = vunpack.c.2.s8 %v299
        %v303 = vunpack.c.3.s8 %v299
        %v304 = vcvt.s32.f32 %v300
        %v305 = vcvt.s32.f32 %v301
        %v306 = vcvt.s32.f32 %v302
        %v307 = vcvt.s32.f32 %v303
        %v308 = vmin.f32 %v265, %v289
        %v309 = vmin.f32 %v266, %v290
        %v310 = vmin.f32 %v267, %v291
        %v311 = vmin.f32 %v268, %v292
        %v312 = vmax.f32 %v253, %v277
        %v313 = vmax.f32 %v254, %v278
        %v314 = vmax.f32 %v255, %v279
        %v315 = vmax.f32 %v256, %v280
        %v316 = vsub.f32 %v308, %v312
        %v317 = vsub.f32 %v309, %v313
        %v318 = vsub.f32 %v310, %v314
        %v319 = vsub.f32 %v311, %v315
        %v320 = vmax.f32 %v316, 0.0
        %v321 = vmax.f32 %v317, 0.0
        %v322 = vmax.f32 %v318, 0.0
        %v323 = vmax.f32 %v319, 0.0
        %v324 = vmin.f32 %v271, %v295
        %v325 = vmin.f32 %v272, %v296
        %v326 = vmin.f32 %v273, %v297
        %v327 = vmin.f32 %v274, %v298
        %v328 = vmax.f32 %v259, %v283
        %v329 = vmax.f32 %v260, %v284
        %v330 = vmax.f32 %v261, %v285
        %v331 = vmax.f32 %v262, %v286
        %v332 = vsub.f32 %v324, %v328
        %v333 = vsub.f32 %v325, %v329
        %v334 = vsub.f32 %v326, %v330
        %v335 = vsub.f32 %v327, %v331
        %v336 = vmax.f32 %v332, 0.0
        %v337 = vmax.f32 %v333, 0.0
        %v338 = vmax.f32 %v334, 0.0
        %v339 = vmax.f32 %v335, 0.0
        %v340 = vmul.f32 %v320, %v336
        %v341 = vmul.f32 %v321, %v337
        %v342 = vmul.f32 %v322, %v338
        %v343 = vmul.f32 %v323, %v339
        %v344 = vsub.f32 %v265, %v253
        %v345 = vsub.f32 %v266, %v254
        %v346 = vsub.f32 %v267, %v255
        %v347 = vsub.f32 %v268, %v256
        %v348 = vsub.f32 %v271, %v259
        %v349 = vsub.f32 %v272, %v260
        %v350 = vsub.f32 %v273, %v261
        %v351 = vsub.f32 %v274, %v262
        %v352 = vmul.f32 %v344, %v348
        %v353 = vmul.f32 %v345, %v349
        %v354 = vmul.f32 %v346, %v350
        %v355 = vmul.f32 %v347, %v351
        %v356 = vsub.f32 %v289, %v277
        %v357 = vsub.f32 %v290, %v278
        %v358 = vsub.f32 %v291, %v279
        %v359 = vsub.f32 %v292, %v280
        %v360 = vsub.f32 %v295, %v283
        %v361 = vsub.f32 %v296, %v284
        %v362 = vsub.f32 %v297, %v285
        %v363 = vsub.f32 %v298, %v286
        %v364 = vmul.f32 %v356, %v360
        %v365 = vmul.f32 %v357, %v361
        %v366 = vmul.f32 %v358, %v362
        %v367 = vmul.f32 %v359, %v363
        %v368 = vadd.f32 %v352, %v364
        %v369 = vadd.f32 %v353, %v365
        %v370 = vadd.f32 %v354, %v366
        %v371 = vadd.f32 %v355, %v367
        %v372 = vsub.f32 %v368, %v340
        %v373 = vsub.f32 %v369, %v341
        %v374 = vsub.f32 %v370, %v342
        %v375 = vsub.f32 %v371, %v343
        %v376 = vadd.f32 %v372, 1e-07
        %v377 = vadd.f32 %v373, 1e-07
        %v378 = vadd.f32 %v374, 1e-07
        %v379 = vadd.f32 %v375, 1e-07
        %v380 = vrcp.pop %v376
        %v381 = vrcp.pop %v377
        %v382 = vrcp.pop %v378
        %v383 = vrcp.pop %v379
        %v384 = vmul.f32 %v340, %v380
        %v385 = vmul.f32 %v341, %v381
        %v386 = vmul.f32 %v342, %v382
        %v387 = vmul.f32 %v343, %v383
        %v388 = vsub.f32 1.0, %v384
        %v389 = vsub.f32 1.0, %v385
        %v390 = vsub.f32 1.0, %v386
        %v391 = vsub.f32 1.0, %v387
        %v392 = vmul.f32 %v388, %v304
        %v393 = vmul.f32 %v389, %v305
        %v394 = vmul.f32 %v390, %v306
        %v395 = vmul.f32 %v391, %v307
        %v396 = vadd.f32 %v392, 0.0
        %v397 = vadd.f32 %v393, 0.0
        %v398 = vadd.f32 %v394, 0.0
        %v399 = vadd.f32 %v395, 0.0
        %v400 = vadd.f32 %v304, 0.0
        %v401 = vadd.f32 %v305, 0.0
        %v402 = vadd.f32 %v306, 0.0
        %v403 = vadd.f32 %v307, 0.0
        %s404 = sld [smem:[#allocation2]]
        %v405 = vadd.f32 %v396, %v397
        %v406 = vadd.f32 %v405, %v398
        %v407 = vadd.f32 %v406, %v399
        %408 = vadd.xlane.f32.xlu0 %v407
        %v409 = vpop.xlane.xlu0 %408
        %v410 = vrot.slane %v409, 4
        %v411 = vadd.f32 %v409, %v410
        %v412 = vrot.slane %v411, 2
        %v413 = vadd.f32 %v411, %v412
        %v414 = vrot.slane %v413, 1
        %v415 = vadd.f32 %v413, %v414
        %s416 = vtos %v415
        %s417 = sadd.f32 %s404, %s416
        %s418 = scalar_lea.smem [#allocation2], 0
        %419 = sst [smem:[%s418]] %s417
        %s420 = sld [smem:[#allocation2 + $0x1]]
        %v421 = vadd.f32 %v400, %v401
        %v422 = vadd.f32 %v421, %v402
        %v423 = vadd.f32 %v422, %v403
        %424 = vadd.xlane.f32.xlu0 %v423
        %v425 = vpop.xlane.xlu0 %424
        %v426 = vrot.slane %v425, 4
        %v427 = vadd.f32 %v425, %v426
        %v428 = vrot.slane %v427, 2
        %v429 = vadd.f32 %v427, %v428
        %v430 = vrot.slane %v429, 1
        %v431 = vadd.f32 %v429, %v430
        %s432 = vtos %v431
        %s433 = sadd.f32 %s420, %s432
        %s434 = scalar_lea.smem [#allocation2], 1
        %435 = sst [smem:[%s434]] %s433
        // Predicated region
        $region41: #{tpu_custom_call.1} parent=27 // pred_check
          %p436 = pneg %p245
        $region42: #{tpu_custom_call.1} parent=27 // pred_check_branch
          %438 = sbr.rel (%p436) target = $region44
        $region43: #{tpu_custom_call.1} parent=27 // pred_region
          %v439 = vlaneseq
          %v440 = vshrl.u32 %v439, 7
          %vm441 = vcmp.eq.s32.totalorder %v440, 0
          %s442 = sld [smem:[#allocation2]]
          %vm443 = vcmp.eq.s32.totalorder %v440, 1
          %s444 = sld [smem:[#allocation2 + $0x1]]
          %v445 = vstv %s444
          %v446 = vsel %vm443, %v445, 0.0
          %v447 = vstv %s442
          %v448 = vsel %vm441, %v447, %v446
          %449 = vst [vmem:[%s241] sm:$0xff] %v448
        $region44: #{tpu_custom_call.1} parent=27 // pred_fallthru
          _
        %s450 = sand.u32 %s98, 1
        %s451 = scalar_lea.sflag [#allocation5], %s450
        %s452 = sand.u32 %s98, 1
        %s453 = smul.addr %s452, 8
        %s454 = scalar_lea.vmem [#allocation8], %s453
        // Predicated region
        $region45: #{tpu_custom_call.1} parent=27 // pred_check
          %p455 = pneg %p108
        $region46: #{tpu_custom_call.1} parent=27 // pred_check_branch
          %457 = sbr.rel (%p455) target = $region48
        $region47: #{tpu_custom_call.1} parent=27 // pred_region
          %s459 = ssub.s32 128, 128
          %460 = vsyncadd %s451, %s459
          %s461 = smul.addr %s26, 128
          %s462 = scalar_lea.hbm %s2, %s461
          %s464 = sshll.u32 %s454, 4
          %s465 = int_to_ptr.vmem [resolvable:$true] %s464
          %467 = dma.vmem_to_hbm [thread:$0]  %s465, 128, %s462, %s451
        $region48: #{tpu_custom_call.1} parent=27 // pred_fallthru
          _
      $region28: #{tpu_custom_call.1} parent=5 // pred_fallthru
        _
      %p468 = scmp.le.s32.totalorder 2, %s17
      // Predicated region
      $region49: #{tpu_custom_call.1} parent=5 // pred_check
        %p469 = pneg %p468
      $region50: #{tpu_custom_call.1} parent=5 // pred_check_branch
        %471 = sbr.rel (%p469) target = $region52
      $region51: #{tpu_custom_call.1} parent=5 // pred_region
        %s472 = ssub.s32 %s17, 2
        // Predicated region
        $region53: #{tpu_custom_call.1} parent=51 // pred_check
          %p473 = pneg %p114
        $region54: #{tpu_custom_call.1} parent=51 // pred_check_branch
          %475 = sbr.rel (%p473) target = $region56
        $region55: #{tpu_custom_call.1} parent=51 // pred_region
          %s476 = sand.u32 %s99, 1
          %s477 = scalar_lea.sflag [#allocation5], %s476
          %s478 = sand.u32 %s99, 1
          %s479 = smul.addr %s478, 8
          %s480 = scalar_lea.vmem [#allocation8], %s479
          %481 = dma.done %s477, 128
        $region56: #{tpu_custom_call.1} parent=51 // pred_fallthru
          _
      $region52: #{tpu_custom_call.1} parent=5 // pred_fallthru
        _
    $region6: #{tpu_custom_call.1} parent=1 // loop_footer
      %s21 = sadd.s32 1, %s17
    $region7: #{tpu_custom_call.1} parent=1 // loop_footer_branch
      %16 = sbr.rel target = $region3
    $region8: #{tpu_custom_call.1} parent=1 // loop_exit
      _
    %482 = vsyncpa [#allocation4], 1
    %s483 = scalar_lea.sflag [#allocation4], 1
    %484 = vsyncpa %s483, 1
    %485 = vsyncpa [#allocation7], 1
    %s486 = scalar_lea.sflag [#allocation7], 1
    %487 = vsyncpa %s486, 1
    %488 = vsyncpa [#allocation5], 1
    %s489 = scalar_lea.sflag [#allocation5], 1
    %490 = vsyncpa %s489, 1

</llo_original>
